<compile_context>
chip_gen: v5e
topology: v5e:2x2
jax: 0.10.0
libtpu: 0.0.40
codegen_flags: <defaults>
</compile_context>

<pallas_src>
import math
import types

import jax
import jax.numpy as jnp
from jax.experimental import pallas as pl
from jax.experimental.pallas import tpu as pltpu


# ----------------------------------------------------------------------------
# Kernel 1: CenterNet modified focal loss on raw logits (sigmoid fused in-kernel)
# ----------------------------------------------------------------------------
_EPS = 1e-4
_LOG_LO = math.log(_EPS)
_LOG_HI = math.log(1.0 - _EPS)


def _make_focal_kernel(total_rows, blk_rows, ragged):
    """Kernel over (split, step) row tiles of a (rows, W) view of the heatmap."""

    def kernel(pred_ref, gt_ref, out_ref, acc_ref, npos_ref):
        i = pl.program_id(1)

        @pl.when(i == 0)
        def _init():
            acc_ref[...] = jnp.zeros_like(acc_ref)
            npos_ref[...] = jnp.zeros_like(npos_ref)

        x = pred_ref[...].astype(jnp.float32)          # (blk, W) logits
        gt = gt_ref[...].astype(jnp.float32)           # targets in [0, 1]

        # Numerically stable log(sigmoid(x)); log(1 - sigmoid(x)) = ls - x.
        # Clips reproduce CenterNet's clip(sigmoid(x), 1e-4, 1-1e-4) exactly.
        ls = jnp.minimum(x, 0.0) - jnp.log(1.0 + jnp.exp(-jnp.abs(x)))
        p = jnp.clip(jnp.exp(ls), _EPS, 1.0 - _EPS)
        log_p = jnp.clip(ls, _LOG_LO, _LOG_HI)
        log_1mp = jnp.clip(ls - x, _LOG_LO, _LOG_HI)

        is_pos = gt == 1.0
        is_neg = gt < 1.0
        if ragged:
            # Mask the padded tail of the last (partial / clamped) block; the
            # padded values are garbage, jnp.where keeps NaN/Inf out of the acc.
            s = pl.program_id(0)
            row0 = (s * pl.num_programs(1) + i) * blk_rows
            rows = row0 + jax.lax.broadcasted_iota(jnp.int32, x.shape, 0)
            valid = rows < total_rows
            is_pos = jnp.logical_and(is_pos, valid)
            is_neg = jnp.logical_and(is_neg, valid)

        one_m_p = 1.0 - p
        pos_term = log_p * one_m_p * one_m_p
        omg = 1.0 - gt
        omg2 = omg * omg
        neg_term = log_1mp * (p * p) * (omg2 * omg2)

        # Single merged block accumulator (pos/neg are mutually exclusive).
        acc_ref[...] += jnp.where(is_pos, pos_term,
                                  jnp.where(is_neg, neg_term, 0.0))
        # num_pos: per-step sublane (XLU) reduce into a tiny 1-row scratch.
        npos_ref[...] += jnp.sum(jnp.where(is_pos, 1.0, 0.0),
                                 axis=0, keepdims=True)

        @pl.when(i == pl.num_programs(1) - 1)
        def _fin():
            out_ref[0, 0] = jnp.sum(acc_ref[...])
            out_ref[0, 1] = jnp.sum(npos_ref[...])

    return kernel


def focal_loss(pred_logits, gt, *, max_block_elems=512 * 512, n_splits=2):
    """CenterNet modified focal loss.  No wrapper-side pad/copy of the heatmap."""
    assert pred_logits.shape == gt.shape
    W = pred_logits.shape[-1]
    R = pred_logits.size // W
    pred2 = pred_logits.reshape(R, W)                 # free (dim collapse only)
    gt2 = gt.reshape(R, W)

    # Row tile: multiple of 8 (or full extent when small); W is always the full
    # last dim so the (8, 128) block constraint is satisfied for any heatmap.
    row_budget = max(8, (max_block_elems // max(W, 1)) // 8 * 8)
    blk = R if R <= row_budget else row_budget
    row_blocks = -(-R // blk)
    ns = n_splits if row_blocks >= n_splits else 1    # "parallel" split (v7x 2 TCs)
    steps = -(-row_blocks // ns)
    ragged = (row_blocks * blk != R) or (ns * steps != row_blocks)

    def in_map(s, i):
        # Clamp so a possibly over-shooting last split step re-reads an in-bounds
        # block (its contribution is killed by the in-kernel row mask).
        return (jnp.minimum(s * steps + i, row_blocks - 1), 0)

    partial = pl.pallas_call(
        _make_focal_kernel(R, blk, ragged),
        out_shape=jax.ShapeDtypeStruct((ns, 2), jnp.float32),
        grid=(ns, steps),
        in_specs=[pl.BlockSpec((blk, W), in_map),
                  pl.BlockSpec((blk, W), in_map)],
        out_specs=pl.BlockSpec((1, 2), lambda s, i: (s, 0),
                               memory_space=pltpu.MemorySpace.SMEM),
        scratch_shapes=[pltpu.VMEM((blk, W), jnp.float32),   # merged loss acc
                        pltpu.VMEM((1, W), jnp.float32)],    # num_pos row acc
        compiler_params=pltpu.CompilerParams(
            dimension_semantics=("parallel", "arbitrary")),
    )(pred2, gt2)

    loss_sum = jnp.sum(partial[:, 0])
    num_pos = jnp.sum(partial[:, 1])
    # num_pos == 0  =>  positive contribution is exactly 0, so this single
    # expression matches both branches of the PyTorch original.
    return -loss_sum / jnp.maximum(num_pos, 1.0)


# ----------------------------------------------------------------------------
# Kernel 2: fused RegL1Loss over several heads sharing (ind, mask).
#   Heads stay in native (B, C_h, HW) layout (no concat / transpose passes).
#   Per (batch, lane-tile) grid step the kernel builds a (K, T) one-hot from the
#   VMEM `ind` column vs. a lane iota and gathers all K objects with one small
#   MXU einsum per head into (K, C_h) accumulators; the masked L1 numerators are
#   reduced once at the last tile.  Only one streaming pass over the features.
# NOTE: `ind` must be in [0, H*W) (CenterNet guarantees this); padded objects
#       have mask = 0 so their gathered values are ignored.
# ----------------------------------------------------------------------------
def _make_gather_l1_kernel(c_sizes, total_hw, ragged):
    n_heads = len(c_sizes)

    def kernel(*refs):
        ind_ref, mask_ref = refs[0], refs[1]
        feat_refs = refs[2:2 + n_heads]
        tgt_refs = refs[2 + n_heads:2 + 2 * n_heads]
        out_ref = refs[2 + 2 * n_heads]
        acc_refs = refs[3 + 2 * n_heads:]

        t = pl.program_id(1)

        @pl.when(t == 0)
        def _init():
            for a in acc_refs:
                a[...] = jnp.zeros_like(a)

        K = ind_ref.shape[1]
        T = feat_refs[0].shape[-1]
        lane0 = t * T
        lane_ids = lane0 + jax.lax.broadcasted_iota(jnp.int32, (K, T), 1)
        onehot = (lane_ids == ind_ref[0]).astype(jnp.float32)        # (K, T)
        if ragged:
            valid = (lane0 + jax.lax.broadcasted_iota(jnp.int32, (1, T), 1)
                     ) < total_hw

        for h in range(n_heads):
            feat = feat_refs[h][0].astype(jnp.float32)               # (C_h, T)
            if ragged:
                feat = jnp.where(valid, feat, 0.0)                   # kill OOB tail
            acc_refs[h][...] += jnp.einsum(
                'kt,ct->kc', onehot, feat,
                precision=jax.lax.Precision.HIGHEST,
                preferred_element_type=jnp.float32)

        @pl.when(t == pl.num_programs(1) - 1)
        def _fin():
            m = mask_ref[0].astype(jnp.float32)                      # (K, 1)
            for h in range(n_heads):
                tgt = tgt_refs[h][0].astype(jnp.float32)             # (K, C_h)
                out_ref[0, h] = jnp.sum(jnp.abs(acc_refs[h][...] - tgt) * m)

    return kernel


def reg_l1_fused(preds_nchw, targets, mask, ind, *, max_lane_tile=2048):
    """Masked-L1 losses for several heads sharing (mask, ind) — one kernel call.

    preds_nchw: list of (B, C_h, H, W) feature maps (raw network outputs).
    targets:    list of (B, K, C_h) regression targets.
    Returns a list of per-head scalar losses (RegL1Loss semantics).
    """
    B, _, H, W = preds_nchw[0].shape
    HW = H * W
    K = ind.shape[1]
    c_sizes = [int(p.shape[1]) for p in preds_nchw]
    n_heads = len(c_sizes)

    T = HW if HW <= max_lane_tile else max_lane_tile   # full extent or mult of 128
    n_tiles = -(-HW // T)
    ragged = (n_tiles * T != HW)

    feats = [p.reshape(B, c, HW) for p, c in zip(preds_nchw, c_sizes)]   # free
    ind3 = ind.astype(jnp.int32).reshape(B, K, 1)
    mask3 = mask.astype(jnp.float32).reshape(B, K, 1)

    feat_specs = [pl.BlockSpec((1, c, T), lambda b, t: (b, 0, t)) for c in c_sizes]
    tgt_specs = [pl.BlockSpec((1, K, c), lambda b, t: (b, 0, 0)) for c in c_sizes]

    # TODO(synk): with B == 1 on v7x only one TensorCore is used; add a lane-tile
    #             parallel split in that case.
    nums = pl.pallas_call(
        _make_gather_l1_kernel(tuple(c_sizes), HW, ragged),
        out_shape=jax.ShapeDtypeStruct((B, n_heads), jnp.float32),
        grid=(B, n_tiles),
        in_specs=[pl.BlockSpec((1, K, 1), lambda b, t: (b, 0, 0)),     # ind
                  pl.BlockSpec((1, K, 1), lambda b, t: (b, 0, 0))]     # mask
                 + feat_specs + tgt_specs,
        out_specs=pl.BlockSpec((1, n_heads), lambda b, t: (b, 0),
                               memory_space=pltpu.MemorySpace.SMEM),
        scratch_shapes=[pltpu.VMEM((K, c), jnp.float32) for c in c_sizes],
        compiler_params=pltpu.CompilerParams(
            dimension_semantics=("parallel", "arbitrary")),
    )(ind3, mask3, *feats, *list(targets))

    msum = jnp.sum(mask.astype(jnp.float32))       # denominator = C_h * sum(mask)
    num_per_head = jnp.sum(nums, axis=0)           # (n_heads,)
    return [num_per_head[h] / (c_sizes[h] * msum + 1e-4) for h in range(n_heads)]


# ----------------------------------------------------------------------------
# Det3DLoss.forward
# ----------------------------------------------------------------------------
def det3d_loss(outputs, batch, opt):
    zero = jnp.float32(0.0)
    hm_loss = dim_loss = loc_loss = rot_loss = off_loss = zero

    for s in range(opt.num_stacks):
        out = outputs[s]
        # output['hm'] = _sigmoid(output['hm']) is fused inside the focal kernel.
        # TODO(synk): on v5e, emit bf16 hm logits/targets from the producer to
        #             halve the focal kernel's HBM traffic (kernel upcasts).
        hm_loss = hm_loss + focal_loss(out['hm'], batch['hm']) / opt.num_stacks

        heads = []
        if opt.dim_weight > 0:
            heads.append(('dim', out['dim'], batch['dim']))
        if opt.loc_weight > 0:
            heads.append(('loc', out['loc'], batch['loc']))
        if opt.rot_weight > 0:
            heads.append(('rot', out['rot'], batch['rot']))
        if opt.reg_offset and opt.off_weight > 0:
            heads.append(('reg', out['reg'], batch['reg']))

        if heads:
            losses = reg_l1_fused([h[1] for h in heads], [h[2] for h in heads],
                                  batch['reg_mask'], batch['ind'])
            per = dict(zip([h[0] for h in heads], losses))
            dim_loss = dim_loss + per.get('dim', zero) / opt.num_stacks
            loc_loss = loc_loss + per.get('loc', zero) / opt.num_stacks
            rot_loss = rot_loss + per.get('rot', zero) / opt.num_stacks
            off_loss = off_loss + per.get('reg', zero) / opt.num_stacks

    loss = (opt.hm_weight * hm_loss + opt.dim_weight * dim_loss +
            opt.loc_weight * loc_loss + opt.rot_weight * rot_loss)
    if opt.reg_offset:
        loss = loss + opt.off_weight * off_loss

    loss_stats = {'loss': loss, 'hm_loss': hm_loss, 'dim_loss': dim_loss,
                  'rot_loss': rot_loss, 'loc_loss': loc_loss}
    if opt.reg_offset:
        loss_stats.update({'off_loss': off_loss})
    return loss, loss_stats


# ----------------------------------------------------------------------------
# Pure-JAX reference (for correctness check only)
# ----------------------------------------------------------------------------
def _ref_focal(pred, gt):
    p = jnp.clip(jax.nn.sigmoid(pred.astype(jnp.float32)), 1e-4, 1.0 - 1e-4)
    gt = gt.astype(jnp.float32)
    pos = (gt == 1.0).astype(jnp.float32)
    neg = (gt < 1.0).astype(jnp.float32)
    neg_w = (1.0 - gt) ** 4
    pos_l = jnp.sum(jnp.log(p) * (1.0 - p) ** 2 * pos)
    neg_l = jnp.sum(jnp.log(1.0 - p) * p ** 2 * neg_w * neg)
    n_pos = jnp.sum(pos)
    return jnp.where(n_pos == 0, -neg_l, -(pos_l + neg_l) / jnp.maximum(n_pos, 1.0))


def _ref_regl1(feat, mask, ind, tgt):
    B, C, H, W = feat.shape
    f = jnp.transpose(feat, (0, 2, 3, 1)).reshape(B, H * W, C).astype(jnp.float32)
    idx = jnp.broadcast_to(ind[:, :, None].astype(jnp.int32), (B, ind.shape[1], C))
    pred = jnp.take_along_axis(f, idx, axis=1)
    m = mask.astype(jnp.float32)[:, :, None]
    num = jnp.sum(jnp.abs(pred * m - tgt.astype(jnp.float32) * m))
    den = jnp.sum(jnp.broadcast_to(m, pred.shape)) + 1e-4
    return num / den


def _ref_det3d_loss(outputs, batch, opt):
    hm = dim = loc = rot = off = jnp.float32(0.0)
    for s in range(opt.num_stacks):
        o = outputs[s]
        hm = hm + _ref_focal(o['hm'], batch['hm']) / opt.num_stacks
        dim = dim + _ref_regl1(o['dim'], batch['reg_mask'], batch['ind'], batch['dim']) / opt.num_stacks
        loc = loc + _ref_regl1(o['loc'], batch['reg_mask'], batch['ind'], batch['loc']) / opt.num_stacks
        rot = rot + _ref_regl1(o['rot'], batch['reg_mask'], batch['ind'], batch['rot']) / opt.num_stacks
        off = off + _ref_regl1(o['reg'], batch['reg_mask'], batch['ind'], batch['reg']) / opt.num_stacks
    loss = (opt.hm_weight * hm + opt.dim_weight * dim + opt.loc_weight * loc +
            opt.rot_weight * rot + opt.off_weight * off)
    return loss


# ----------------------------------------------------------------------------
if __name__ == "__main__":
    opt = types.SimpleNamespace(
        mse_loss=False, reg_loss='l1', dense_wh=False, norm_wh=False,
        cat_spec_wh=False, num_stacks=1, reg_offset=True,
        hm_weight=1.0, dim_weight=1.0, loc_weight=1.0, rot_weight=1.0,
        off_weight=1.0,
    )

    B, C_HM, H, W, K = 2, 3, 16, 16, 8
    key = jax.random.PRNGKey(0)
    ks = jax.random.split(key, 18)

    outputs = [{
        'hm':  jax.random.normal(ks[0], (B, C_HM, H, W), jnp.float32),
        'dim': jax.random.normal(ks[1], (B, 3, H, W), jnp.float32),
        'loc': jax.random.normal(ks[2], (B, 3, H, W), jnp.float32),
        'rot': jax.random.normal(ks[3], (B, 8, H, W), jnp.float32),
        'reg': jax.random.normal(ks[4], (B, 2, H, W), jnp.float32),
    }]

    # Ground-truth heatmap in [0, 0.9] with a few exact 1.0 peaks.
    gt_hm = 0.9 * jax.random.uniform(ks[5], (B, C_HM, H, W), jnp.float32)
    gt_hm = gt_hm.at[0, 0, 3, 4].set(1.0)
    gt_hm = gt_hm.at[0, 2, 10, 7].set(1.0)
    gt_hm = gt_hm.at[1, 1, 5, 12].set(1.0)

    reg_mask = jnp.array([[1, 1, 1, 1, 1, 0, 0, 0],
                          [1, 1, 1, 0, 0, 0, 0, 0]], jnp.float32)
    ind = jax.random.randint(ks[6], (B, K), 0, H * W, jnp.int32)

    batch = {
        'hm': gt_hm,
        'reg_mask': reg_mask,
        'ind': ind,
        'dim': jax.random.normal(ks[7], (B, K, 3), jnp.float32),
        'loc': jax.random.normal(ks[8], (B, K, 3), jnp.float32),
        'rot': jax.random.normal(ks[9], (B, K, 8), jnp.float32),
        'reg': jax.random.normal(jax.random.PRNGKey(1), (B, K, 2), jnp.float32),
    }

    loss, loss_stats = det3d_loss(outputs, batch, opt)
    loss = jax.block_until_ready(loss)
    ref = jax.block_until_ready(_ref_det3d_loss(outputs, batch, opt))
    assert jnp.allclose(loss, ref, rtol=1e-3, atol=1e-3), (loss, ref)

    # --- Ragged / multi-tile path check (forced small tiles, odd spatial dims) --
    H2, W2 = 23, 40
    hm_p = jax.random.normal(ks[10], (B, C_HM, H2, W2), jnp.float32)
    hm_g = 0.9 * jax.random.uniform(ks[11], (B, C_HM, H2, W2), jnp.float32)
    hm_g = hm_g.at[0, 1, 7, 11].set(1.0)
    fl = jax.block_until_ready(focal_loss(hm_p, hm_g, max_block_elems=8 * W2))
    assert jnp.allclose(fl, _ref_focal(hm_p, hm_g), rtol=1e-3, atol=1e-3)

    dimp = jax.random.normal(ks[12], (B, 3, H2, W2), jnp.float32)
    regp = jax.random.normal(ks[13], (B, 2, H2, W2), jnp.float32)
    ind2 = jax.random.randint(ks[14], (B, K), 0, H2 * W2, jnp.int32)
    dimt = jax.random.normal(ks[15], (B, K, 3), jnp.float32)
    regt = jax.random.normal(ks[16], (B, K, 2), jnp.float32)
    l_dim, l_reg = reg_l1_fused([dimp, regp], [dimt, regt], reg_mask, ind2,
                                max_lane_tile=256)
    l_dim, l_reg = jax.block_until_ready((l_dim, l_reg))
    assert jnp.allclose(l_dim, _ref_regl1(dimp, reg_mask, ind2, dimt),
                        rtol=1e-3, atol=1e-3)
    assert jnp.allclose(l_reg, _ref_regl1(regp, reg_mask, ind2, regt),
                        rtol=1e-3, atol=1e-3)

    print("KERNEL_OK")
</pallas_src>

<mosaic_0001>
module attributes {stable_mosaic.version = 11 : i64} {
  func.func @kernel(%arg0: i32, %arg1: i32, %arg2: memref<96x16xf32, #tpu.memory_space<vmem>>, %arg3: memref<96x16xf32, #tpu.memory_space<vmem>>, %arg4: memref<1x2xf32, #tpu.memory_space<smem>>, %arg5: memref<96x16xf32, #tpu.memory_space<vmem>>, %arg6: memref<1x16xf32, #tpu.memory_space<vmem>>) attributes {dimension_semantics = [#tpu.dimension_semantics<parallel>, #tpu.dimension_semantics<arbitrary>], iteration_bounds = array<i64: 1, 1>, scalar_prefetch = 0 : i64, scratch_operands = 2 : i64, tpu.core_type = #tpu.core_type<tc>, window_params = [{transform_indices = @transform_0, window_bounds = array<i64: 96, 16>}, {transform_indices = @transform_1, window_bounds = array<i64: 96, 16>}, {transform_indices = @transform_2, window_bounds = array<i64: 1, 2>}]} {
    %c0_i32 = arith.constant 0 : i32
    %0 = arith.cmpi eq, %arg1, %c0_i32 : i32
    %1 = arith.extui %0 : i1 to i32
    %c0_i32_0 = arith.constant 0 : i32
    %2 = arith.cmpi ne, %1, %c0_i32_0 : i32
    scf.if %2 {
      %cst_30 = arith.constant 0.000000e+00 : f32
      %61 = vector.broadcast %cst_30 : f32 to vector<96x16xf32>
      %c0_31 = arith.constant 0 : index
      %c0_32 = arith.constant 0 : index
      %62 = vector.load %arg5[%c0_31, %c0_32] : memref<96x16xf32, #tpu.memory_space<vmem>>, vector<96x16xf32>
      tpu.vector_store %arg5[%c0_31, %c0_32], %61 {strides = array<i32>} : memref<96x16xf32, #tpu.memory_space<vmem>>, vector<96x16xf32>,
      %cst_33 = arith.constant 0.000000e+00 : f32
      %63 = vector.broadcast %cst_33 : f32 to vector<1x16xf32>
      %c0_34 = arith.constant 0 : index
      %c0_35 = arith.constant 0 : index
      %64 = vector.load %arg6[%c0_34, %c0_35] : memref<1x16xf32, #tpu.memory_space<vmem>>, vector<1x16xf32>
      tpu.vector_store %arg6[%c0_34, %c0_35], %63 {strides = array<i32>} : memref<1x16xf32, #tpu.memory_space<vmem>>, vector<1x16xf32>,
    } else {
    }
    %c0 = arith.constant 0 : index
    %c0_1 = arith.constant 0 : index
    %3 = vector.load %arg2[%c0, %c0_1] : memref<96x16xf32, #tpu.memory_space<vmem>>, vector<96x16xf32>
    %c0_2 = arith.constant 0 : index
    %c0_3 = arith.constant 0 : index
    %4 = vector.load %arg3[%c0_2, %c0_3] : memref<96x16xf32, #tpu.memory_space<vmem>>, vector<96x16xf32>
    %cst = arith.constant 0.000000e+00 : f32
    %5 = vector.broadcast %cst : f32 to vector<96x16xf32>
    %6 = arith.minimumf %3, %5 : vector<96x16xf32>
    %7 = math.absf %3 : vector<96x16xf32>
    %cst_4 = arith.constant 0.000000e+00 : f32
    %8 = vector.broadcast %cst_4 : f32 to vector<96x16xf32>
    %9 = arith.subf %8, %7 : vector<96x16xf32>
    %10 = math.exp %9 : vector<96x16xf32>
    %cst_5 = arith.constant 1.000000e+00 : f32
    %11 = vector.broadcast %cst_5 : f32 to vector<96x16xf32>
    %12 = arith.addf %11, %10 : vector<96x16xf32>
    %13 = math.log %12 : vector<96x16xf32>
    %14 = arith.subf %6, %13 : vector<96x16xf32>
    %15 = math.exp %14 : vector<96x16xf32>
    %cst_6 = arith.constant 9.99999974E-5 : f32
    %cst_7 = arith.constant 0.999899983 : f32
    %16 = vector.broadcast %cst_6 : f32 to vector<96x16xf32>
    %17 = arith.maximumf %16, %15 : vector<96x16xf32>
    %18 = vector.broadcast %cst_7 : f32 to vector<96x16xf32>
    %19 = arith.minimumf %18, %17 : vector<96x16xf32>
    %cst_8 = arith.constant -9.21034049 : f32
    %cst_9 = arith.constant -1.000050e-04 : f32
    %20 = vector.broadcast %cst_8 : f32 to vector<96x16xf32>
    %21 = arith.maximumf %20, %14 : vector<96x16xf32>
    %22 = vector.broadcast %cst_9 : f32 to vector<96x16xf32>
    %23 = arith.minimumf %22, %21 : vector<96x16xf32>
    %24 = arith.subf %14, %3 : vector<96x16xf32>
    %cst_10 = arith.constant -9.21034049 : f32
    %cst_11 = arith.constant -1.000050e-04 : f32
    %25 = vector.broadcast %cst_10 : f32 to vector<96x16xf32>
    %26 = arith.maximumf %25, %24 : vector<96x16xf32>
    %27 = vector.broadcast %cst_11 : f32 to vector<96x16xf32>
    %28 = arith.minimumf %27, %26 : vector<96x16xf32>
    %cst_12 = arith.constant 1.000000e+00 : f32
    %29 = vector.broadcast %cst_12 : f32 to vector<96x16xf32>
    %30 = arith.cmpf oeq, %4, %29 : vector<96x16xf32>
    %cst_13 = arith.constant 1.000000e+00 : f32
    %31 = vector.broadcast %cst_13 : f32 to vector<96x16xf32>
    %32 = arith.cmpf olt, %4, %31 : vector<96x16xf32>
    %cst_14 = arith.constant 1.000000e+00 : f32
    %33 = vector.broadcast %cst_14 : f32 to vector<96x16xf32>
    %34 = arith.subf %33, %19 : vector<96x16xf32>
    %35 = arith.mulf %23, %34 : vector<96x16xf32>
    %36 = arith.mulf %35, %34 : vector<96x16xf32>
    %cst_15 = arith.constant 1.000000e+00 : f32
    %37 = vector.broadcast %cst_15 : f32 to vector<96x16xf32>
    %38 = arith.subf %37, %4 : vector<96x16xf32>
    %39 = arith.mulf %38, %38 : vector<96x16xf32>
    %40 = arith.mulf %19, %19 : vector<96x16xf32>
    %41 = arith.mulf %28, %40 : vector<96x16xf32>
    %42 = arith.mulf %39, %39 : vector<96x16xf32>
    %43 = arith.mulf %41, %42 : vector<96x16xf32>
    %c0_16 = arith.constant 0 : index
    %c0_17 = arith.constant 0 : index
    %44 = vector.load %arg5[%c0_16, %c0_17] : memref<96x16xf32, #tpu.memory_space<vmem>>, vector<96x16xf32>
    %cst_18 = arith.constant 0.000000e+00 : f32
    %45 = vector.broadcast %cst_18 : f32 to vector<96x16xf32>
    %46 = arith.select %32, %43, %45 : vector<96x16xi1>, vector<96x16xf32>
    %47 = arith.select %30, %36, %46 : vector<96x16xi1>, vector<96x16xf32>
    %48 = arith.addf %44, %47 : vector<96x16xf32>
    %c0_19 = arith.constant 0 : index
    %c0_20 = arith.constant 0 : index
    %49 = vector.load %arg5[%c0_19, %c0_20] : memref<96x16xf32, #tpu.memory_space<vmem>>, vector<96x16xf32>
    tpu.vector_store %arg5[%c0_19, %c0_20], %48 {strides = array<i32>} : memref<96x16xf32, #tpu.memory_space<vmem>>, vector<96x16xf32>,
    %c0_21 = arith.constant 0 : index
    %c0_22 = arith.constant 0 : index
    %50 = vector.load %arg6[%c0_21, %c0_22] : memref<1x16xf32, #tpu.memory_space<vmem>>, vector<1x16xf32>
    %cst_23 = arith.constant 1.000000e+00 : f32
    %cst_24 = arith.constant 0.000000e+00 : f32
    %51 = vector.broadcast %cst_23 : f32 to vector<96x16xf32>
    %52 = vector.broadcast %cst_24 : f32 to vector<96x16xf32>
    %53 = arith.select %30, %51, %52 : vector<96x16xi1>, vector<96x16xf32>
    %cst_25 = arith.constant dense<0.000000e+00> : vector<16xf32>
    %54 = vector.multi_reduction <add>, %53, %cst_25 [0] : vector<96x16xf32> to vector<16xf32>
    %55 = vector.shape_cast %54 : vector<16xf32> to vector<1x16xf32>
    %56 = arith.addf %50, %55 : vector<1x16xf32>
    %c0_26 = arith.constant 0 : index
    %c0_27 = arith.constant 0 : index
    %57 = vector.load %arg6[%c0_26, %c0_27] : memref<1x16xf32, #tpu.memory_space<vmem>>, vector<1x16xf32>
    tpu.vector_store %arg6[%c0_26, %c0_27], %56 {strides = array<i32>} : memref<1x16xf32, #tpu.memory_space<vmem>>, vector<1x16xf32>,
    %c0_i32_28 = arith.constant 0 : i32
    %58 = arith.cmpi eq, %arg1, %c0_i32_28 : i32
    %59 = arith.extui %58 : i1 to i32
    %c0_i32_29 = arith.constant 0 : i32
    %60 = arith.cmpi ne, %59, %c0_i32_29 : i32
    scf.if %60 {
      %c0_30 = arith.constant 0 : index
      %c0_31 = arith.constant 0 : index
      %61 = vector.load %arg5[%c0_30, %c0_31] : memref<96x16xf32, #tpu.memory_space<vmem>>, vector<96x16xf32>
      %62 = vector.shape_cast %61 : vector<96x16xf32> to vector<1x96x16xf32>
      %cst_32 = arith.constant dense<0.000000e+00> : vector<1xf32>
      %63 = vector.multi_reduction <add>, %62, %cst_32 [1, 2] : vector<1x96x16xf32> to vector<1xf32>
      %64 = vector.shape_cast %63 : vector<1xf32> to vector<1x1x1xf32>
      %65 = vector.extract %64[0, 0, 0] : f32 from vector<1x1x1xf32>
      %c0_33 = arith.constant 0 : index
      %c0_34 = arith.constant 0 : index
      %66 = memref.load %arg4[%c0_33, %c0_34] : memref<1x2xf32, #tpu.memory_space<smem>>
      memref.store %65, %arg4[%c0_33, %c0_34] : memref<1x2xf32, #tpu.memory_space<smem>>
      %c0_35 = arith.constant 0 : index
      %c0_36 = arith.constant 0 : index
      %67 = vector.load %arg6[%c0_35, %c0_36] : memref<1x16xf32, #tpu.memory_space<vmem>>, vector<1x16xf32>
      %68 = vector.shape_cast %67 : vector<1x16xf32> to vector<1x1x16xf32>
      %cst_37 = arith.constant dense<0.000000e+00> : vector<1xf32>
      %69 = vector.multi_reduction <add>, %68, %cst_37 [1, 2] : vector<1x1x16xf32> to vector<1xf32>
      %70 = vector.shape_cast %69 : vector<1xf32> to vector<1x1x1xf32>
      %71 = vector.extract %70[0, 0, 0] : f32 from vector<1x1x1xf32>
      %c0_38 = arith.constant 0 : index
      %c1 = arith.constant 1 : index
      %72 = memref.load %arg4[%c0_38, %c1] : memref<1x2xf32, #tpu.memory_space<smem>>
      memref.store %71, %arg4[%c0_38, %c1] : memref<1x2xf32, #tpu.memory_space<smem>>
    } else {
    }
    return
  }
  func.func @transform_0(%arg0: i32, %arg1: i32) -> (i32, i32) {
    %c1_i32 = arith.constant 1 : i32
    %0 = arith.muli %arg0, %c1_i32 : i32
    %1 = arith.addi %0, %arg1 : i32
    %c0_i32 = arith.constant 0 : i32
    %2 = arith.minsi %1, %c0_i32 : i32
    %c0_i32_0 = arith.constant 0 : i32
    %c0_i32_1 = arith.constant 0 : i32
    return %2, %c0_i32_0 : i32, i32
  }
  func.func @transform_1(%arg0: i32, %arg1: i32) -> (i32, i32) {
    %c1_i32 = arith.constant 1 : i32
    %0 = arith.muli %arg0, %c1_i32 : i32
    %1 = arith.addi %0, %arg1 : i32
    %c0_i32 = arith.constant 0 : i32
    %2 = arith.minsi %1, %c0_i32 : i32
    %c0_i32_0 = arith.constant 0 : i32
    %c0_i32_1 = arith.constant 0 : i32
    return %2, %c0_i32_0 : i32, i32
  }
  func.func @transform_2(%arg0: i32, %arg1: i32) -> (i32, i32) {
    %c0_i32 = arith.constant 0 : i32
    %c0_i32_0 = arith.constant 0 : i32
    return %arg0, %c0_i32 : i32, i32
  }
}

</mosaic_0001>

<llo_original>
// kernel: tpu_custom_call.1
$region0: #{tpu_custom_call.1}
  #allocation0 [shape = 'u32[]', space=smem, size = 0x4, offset = 0x4, fixed_abs, tag = 'smem constant byte address 0x4 - core index']
  #allocation1 [shape = 'u32[72,128]{1,0:T(1,128)}', space=vmem, size = 0x9000, scoped, tag = 'internal scratch']
  #allocation2 [shape = 'f32[96,16]{1,0:T(8,128)}', space=vmem, size = 0xc000, scoped, tag = 'scratch operand']
  #allocation3 [shape = 'f32[1,16]{1,0:T(1,128)}', space=vmem, size = 0x200, scoped, tag = 'scratch operand']
  %s0 = inlined_call_operand.vmem [shape: f32[96,16], index: 0, kind: input, shape index: {}]
  %s1 = inlined_call_operand.vmem [shape: f32[96,16], index: 1, kind: input, shape index: {}]
  %s2 = inlined_call_operand.hbm [shape: f32[1,2], index: 2, kind: output, shape index: {}]
  %s3 = sld [smem:[#allocation0]]
  $region26: #{tpu_custom_call.1} parent=0
    _
  %s5 = ssub.s32 1, %s3
  %s6 = scalar_select 0, %s5, %s3
  $region1: #{tpu_custom_call.1} parent=0
    #allocation4 [shape = 'u8[512]{0}', space=smem, size = 0x200, scoped, tag = 'output window, operand 0, single buffered']
    #allocation5 [shape = 's32[1]{0}', space=sflag, size = 0x4, scoped, tag = 'scoped memory for tpu_custom_call.1']
    %7 = vsyncpa [#allocation5], 0
    // Predicated region
    $region2: #{tpu_custom_call.1} parent=1 // pred_check
      _
    $region3: #{tpu_custom_call.1} parent=1 // pred_check_branch
      %9 = sbr.rel (0) target = $region5
    $region4: #{tpu_custom_call.1} parent=1 // pred_region
      %s10 = sadd.s32 0, 0
      %p11 = scmp.lt.s32.totalorder %s10, 0
      %s12 = scalar_select %p11, %s10, 0
      %s13 = smul.u32 12, %s12
      %p14 = scmp.lt.s32.totalorder %s13, 11
      %s15 = scalar_select %p14, %s13, 11
      %s16 = smul.addr %s15, 8
      %s17 = scalar_lea.vmem %s0, %s16
      %s18 = sadd.s32 0, 0
      %p19 = scmp.lt.s32.totalorder %s18, 0
      %s20 = scalar_select %p19, %s18, 0
      %s21 = smul.u32 12, %s20
    $region5: #{tpu_custom_call.1} parent=1 // pred_fallthru
      _
    // Predicated region
    $region6: #{tpu_custom_call.1} parent=1 // pred_check
      _
    $region7: #{tpu_custom_call.1} parent=1 // pred_check_branch
      %23 = sbr.rel (0) target = $region9
    $region8: #{tpu_custom_call.1} parent=1 // pred_region
      %s24 = sadd.s32 0, 0
      %p25 = scmp.lt.s32.totalorder %s24, 0
      %s26 = scalar_select %p25, %s24, 0
      %s27 = smul.u32 12, %s26
      %p28 = scmp.lt.s32.totalorder %s27, 11
      %s29 = scalar_select %p28, %s27, 11
      %s30 = smul.addr %s29, 8
      %s31 = scalar_lea.vmem %s1, %s30
      %s32 = sadd.s32 0, 0
      %p33 = scmp.lt.s32.totalorder %s32, 0
      %s34 = scalar_select %p33, %s32, 0
      %s35 = smul.u32 12, %s34
    $region9: #{tpu_custom_call.1} parent=1 // pred_fallthru
      _
    %s36 = sadd.s32 0, 0
    %p37 = scmp.lt.s32.totalorder %s36, 0
    %s38 = scalar_select %p37, %s36, 0
    %s39 = smul.u32 12, %s38
    %p40 = scmp.lt.s32.totalorder %s39, 11
    %s41 = scalar_select %p40, %s39, 11
    %s42 = smul.addr %s41, 8
    %s43 = scalar_lea.vmem %s0, %s42
    %s44 = sadd.s32 0, 0
    %p45 = scmp.lt.s32.totalorder %s44, 0
    %s46 = scalar_select %p45, %s44, 0
    %s47 = smul.u32 12, %s46
    %p48 = scmp.lt.s32.totalorder %s47, 11
    %s49 = scalar_select %p48, %s47, 11
    %s50 = smul.addr %s49, 8
    %s51 = scalar_lea.vmem %s1, %s50
    %s52 = sadd.s32 0, 0
    %p53 = scmp.lt.s32.totalorder %s52, 0
    %s54 = scalar_select %p53, %s52, 0
    %s55 = smul.u32 12, %s54
    %p56 = scmp.lt.s32.totalorder %s55, 11
    %s57 = scalar_select %p56, %s55, 11
    %s58 = smul.addr %s57, 8
    %s59 = scalar_lea.vmem %s0, %s58
    %s60 = sadd.s32 0, 0
    %p61 = scmp.lt.s32.totalorder %s60, 0
    %s62 = scalar_select %p61, %s60, 0
    %s63 = smul.u32 12, %s62
    %s64 = sadd.s32 0, 0
    %p65 = scmp.lt.s32.totalorder %s64, 0
    %s66 = scalar_select %p65, %s64, 0
    %s67 = smul.u32 12, %s66
    %p68 = scmp.lt.s32.totalorder %s67, 11
    %s69 = scalar_select %p68, %s67, 11
    %s70 = smul.addr %s69, 8
    %s71 = scalar_lea.vmem %s1, %s70
    %s72 = sadd.s32 0, 0
    %p73 = scmp.lt.s32.totalorder %s72, 0
    %s74 = scalar_select %p73, %s72, 0
    %s75 = smul.u32 12, %s74
    %p76 = scmp.eq.s32.totalorder 0, 0
    // Predicated region
    $region10: #{tpu_custom_call.1} parent=1 // pred_check
      %p77 = pneg %p76
    $region11: #{tpu_custom_call.1} parent=1 // pred_check_branch
      %79 = sbr.rel (%p77) target = $region13
    $region12: #{tpu_custom_call.1} parent=1 // pred_region
      %vm80 = vcmask 130048
      %81 = vst.msk [vmem:[#allocation2] sm:$0xff] %vm80, 0.0
      %82 = vst.msk [vmem:[#allocation2 + $0x8] sm:$0xff] %vm80, 0.0
      %83 = vst.msk [vmem:[#allocation2 + $0x10] sm:$0xff] %vm80, 0.0
      %84 = vst.msk [vmem:[#allocation2 + $0x18] sm:$0xff] %vm80, 0.0
      %85 = vst.msk [vmem:[#allocation2 + $0x20] sm:$0xff] %vm80, 0.0
      %86 = vst.msk [vmem:[#allocation2 + $0x28] sm:$0xff] %vm80, 0.0
      %87 = vst.msk [vmem:[#allocation2 + $0x30] sm:$0xff] %vm80, 0.0
      %88 = vst.msk [vmem:[#allocation2 + $0x38] sm:$0xff] %vm80, 0.0
      %89 = vst.msk [vmem:[#allocation2 + $0x40] sm:$0xff] %vm80, 0.0
      %90 = vst.msk [vmem:[#allocation2 + $0x48] sm:$0xff] %vm80, 0.0
      %91 = vst.msk [vmem:[#allocation2 + $0x50] sm:$0xff] %vm80, 0.0
      %92 = vst.msk [vmem:[#allocation2 + $0x58] sm:$0xff] %vm80, 0.0
      %vm93 = vcmask 122880
      %94 = vst.msk [vmem:[#allocation3] sm:$0x1] %vm93, 0.0
    $region13: #{tpu_custom_call.1} parent=1 // pred_fallthru
      _
    %v95 = vld [vmem:[%s59] sm:$0xff]
    %v96 = vld [vmem:[%s59 + $0x8] sm:$0xff]
    %v97 = vld [vmem:[%s59 + $0x10] sm:$0xff]
    %v98 = vld [vmem:[%s59 + $0x18] sm:$0xff]
    %v99 = vld [vmem:[%s59 + $0x20] sm:$0xff]
    %v100 = vld [vmem:[%s59 + $0x28] sm:$0xff]
    %v101 = vld [vmem:[%s59 + $0x30] sm:$0xff]
    %v102 = vld [vmem:[%s59 + $0x38] sm:$0xff]
    %v103 = vld [vmem:[%s59 + $0x40] sm:$0xff]
    %v104 = vld [vmem:[%s59 + $0x48] sm:$0xff]
    %v105 = vld [vmem:[%s59 + $0x50] sm:$0xff]
    %v106 = vld [vmem:[%s59 + $0x58] sm:$0xff]
    %v107 = vld [vmem:[%s71] sm:$0xff]
    %v108 = vld [vmem:[%s71 + $0x8] sm:$0xff]
    %v109 = vld [vmem:[%s71 + $0x10] sm:$0xff]
    %v110 = vld [vmem:[%s71 + $0x18] sm:$0xff]
    %v111 = vld [vmem:[%s71 + $0x20] sm:$0xff]
    %v112 = vld [vmem:[%s71 + $0x28] sm:$0xff]
    %v113 = vld [vmem:[%s71 + $0x30] sm:$0xff]
    %v114 = vld [vmem:[%s71 + $0x38] sm:$0xff]
    %v115 = vld [vmem:[%s71 + $0x40] sm:$0xff]
    %v116 = vld [vmem:[%s71 + $0x48] sm:$0xff]
    %v117 = vld [vmem:[%s71 + $0x50] sm:$0xff]
    %v118 = vld [vmem:[%s71 + $0x58] sm:$0xff]
    %v119 = vmin.f32 %v95, 0.0
    %v120 = vmin.f32 %v96, 0.0
    %v121 = vmin.f32 %v97, 0.0
    %v122 = vmin.f32 %v98, 0.0
    %v123 = vmin.f32 %v99, 0.0
    %v124 = vmin.f32 %v100, 0.0
    %v125 = vmin.f32 %v101, 0.0
    %v126 = vmin.f32 %v102, 0.0
    %v127 = vmin.f32 %v103, 0.0
    %v128 = vmin.f32 %v104, 0.0
    %v129 = vmin.f32 %v105, 0.0
    %v130 = vmin.f32 %v106, 0.0
    %v131 = vand.u32 2147483647, %v95
    %v132 = vand.u32 2147483647, %v96
    %v133 = vand.u32 2147483647, %v97
    %v134 = vand.u32 2147483647, %v98
    %v135 = vand.u32 2147483647, %v99
    %v136 = vand.u32 2147483647, %v100
    %v137 = vand.u32 2147483647, %v101
    %v138 = vand.u32 2147483647, %v102
    %v139 = vand.u32 2147483647, %v103
    %v140 = vand.u32 2147483647, %v104
    %v141 = vand.u32 2147483647, %v105
    %v142 = vand.u32 2147483647, %v106
    %v143 = vsub.f32 0.0, %v131
    %v144 = vsub.f32 0.0, %v132
    %v145 = vsub.f32 0.0, %v133
    %v146 = vsub.f32 0.0, %v134
    %v147 = vsub.f32 0.0, %v135
    %v148 = vsub.f32 0.0, %v136
    %v149 = vsub.f32 0.0, %v137
    %v150 = vsub.f32 0.0, %v138
    %v151 = vsub.f32 0.0, %v139
    %v152 = vsub.f32 0.0, %v140
    %v153 = vsub.f32 0.0, %v141
    %v154 = vsub.f32 0.0, %v142
    %v155 = vmul.f32 %v143, 1.442695
    %v156 = vpow.pop %v155
    %v157 = vmul.f32 %v144, 1.442695
    %v158 = vpow.pop %v157
    %v159 = vmul.f32 %v145, 1.442695
    %v160 = vpow.pop %v159
    %v161 = vmul.f32 %v146, 1.442695
    %v162 = vpow.pop %v161
    %v163 = vmul.f32 %v147, 1.442695
    %v164 = vpow.pop %v163
    %v165 = vmul.f32 %v148, 1.442695
    %v166 = vpow.pop %v165
    %v167 = vmul.f32 %v149, 1.442695
    %v168 = vpow.pop %v167
    %v169 = vmul.f32 %v150, 1.442695
    %v170 = vpow.pop %v169
    %v171 = vmul.f32 %v151, 1.442695
    %v172 = vpow.pop %v171
    %v173 = vmul.f32 %v152, 1.442695
    %v174 = vpow.pop %v173
    %v175 = vmul.f32 %v153, 1.442695
    %v176 = vpow.pop %v175
    %v177 = vmul.f32 %v154, 1.442695
    %v178 = vpow.pop %v177
    %v179 = vadd.f32 %v156, 1.0
    %v180 = vadd.f32 %v158, 1.0
    %v181 = vadd.f32 %v160, 1.0
    %v182 = vadd.f32 %v162, 1.0
    %v183 = vadd.f32 %v164, 1.0
    %v184 = vadd.f32 %v166, 1.0
    %v185 = vadd.f32 %v168, 1.0
    %v186 = vadd.f32 %v170, 1.0
    %v187 = vadd.f32 %v172, 1.0
    %v188 = vadd.f32 %v174, 1.0
    %v189 = vadd.f32 %v176, 1.0
    %v190 = vadd.f32 %v178, 1.0
    %v191 = vlog2.pop %v179
    %v192 = vmul.f32 %v191, 0.6931472
    %v193 = vlog2.pop %v180
    %v194 = vmul.f32 %v193, 0.6931472
    %v195 = vlog2.pop %v181
    %v196 = vmul.f32 %v195, 0.6931472
    %v197 = vlog2.pop %v182
    %v198 = vmul.f32 %v197, 0.6931472
    %v199 = vlog2.pop %v183
    %v200 = vmul.f32 %v199, 0.6931472
    %v201 = vlog2.pop %v184
    %v202 = vmul.f32 %v201, 0.6931472
    %v203 = vlog2.pop %v185
    %v204 = vmul.f32 %v203, 0.6931472
    %v205 = vlog2.pop %v186
    %v206 = vmul.f32 %v205, 0.6931472
    %v207 = vlog2.pop %v187
    %v208 = vmul.f32 %v207, 0.6931472
    %v209 = vlog2.pop %v188
    %v210 = vmul.f32 %v209, 0.6931472
    %v211 = vlog2.pop %v189
    %v212 = vmul.f32 %v211, 0.6931472
    %v213 = vlog2.pop %v190
    %v214 = vmul.f32 %v213, 0.6931472
    %v215 = vsub.f32 %v119, %v192
    %v216 = vsub.f32 %v120, %v194
    %v217 = vsub.f32 %v121, %v196
    %v218 = vsub.f32 %v122, %v198
    %v219 = vsub.f32 %v123, %v200
    %v220 = vsub.f32 %v124, %v202
    %v221 = vsub.f32 %v125, %v204
    %v222 = vsub.f32 %v126, %v206
    %v223 = vsub.f32 %v127, %v208
    %v224 = vsub.f32 %v128, %v210
    %v225 = vsub.f32 %v129, %v212
    %v226 = vsub.f32 %v130, %v214
    %v227 = vmul.f32 %v215, 1.442695
    %v228 = vpow.pop %v227
    %v229 = vmul.f32 %v216, 1.442695
    %v230 = vpow.pop %v229
    %v231 = vmul.f32 %v217, 1.442695
    %v232 = vpow.pop %v231
    %v233 = vmul.f32 %v218, 1.442695
    %v234 = vpow.pop %v233
    %v235 = vmul.f32 %v219, 1.442695
    %v236 = vpow.pop %v235
    %v237 = vmul.f32 %v220, 1.442695
    %v238 = vpow.pop %v237
    %v239 = vmul.f32 %v221, 1.442695
    %v240 = vpow.pop %v239
    %v241 = vmul.f32 %v222, 1.442695
    %v242 = vpow.pop %v241
    %v243 = vmul.f32 %v223, 1.442695
    %v244 = vpow.pop %v243
    %v245 = vmul.f32 %v224, 1.442695
    %v246 = vpow.pop %v245
    %v247 = vmul.f32 %v225, 1.442695
    %v248 = vpow.pop %v247
    %v249 = vmul.f32 %v226, 1.442695
    %v250 = vpow.pop %v249
    %v251 = vmax.f32 %v228, 0.0001
    %v252 = vmax.f32 %v230, 0.0001
    %v253 = vmax.f32 %v232, 0.0001
    %v254 = vmax.f32 %v234, 0.0001
    %v255 = vmax.f32 %v236, 0.0001
    %v256 = vmax.f32 %v238, 0.0001
    %v257 = vmax.f32 %v240, 0.0001
    %v258 = vmax.f32 %v242, 0.0001
    %v259 = vmax.f32 %v244, 0.0001
    %v260 = vmax.f32 %v246, 0.0001
    %v261 = vmax.f32 %v248, 0.0001
    %v262 = vmax.f32 %v250, 0.0001
    %v263 = vmin.f32 %v251, 0.9999
    %v264 = vmin.f32 %v252, 0.9999
    %v265 = vmin.f32 %v253, 0.9999
    %v266 = vmin.f32 %v254, 0.9999
    %v267 = vmin.f32 %v255, 0.9999
    %v268 = vmin.f32 %v256, 0.9999
    %v269 = vmin.f32 %v257, 0.9999
    %v270 = vmin.f32 %v258, 0.9999
    %v271 = vmin.f32 %v259, 0.9999
    %v272 = vmin.f32 %v260, 0.9999
    %v273 = vmin.f32 %v261, 0.9999
    %v274 = vmin.f32 %v262, 0.9999
    %v275 = vmax.f32 %v215, -9.2103405
    %v276 = vmax.f32 %v216, -9.2103405
    %v277 = vmax.f32 %v217, -9.2103405
    %v278 = vmax.f32 %v218, -9.2103405
    %v279 = vmax.f32 %v219, -9.2103405
    %v280 = vmax.f32 %v220, -9.2103405
    %v281 = vmax.f32 %v221, -9.2103405
    %v282 = vmax.f32 %v222, -9.2103405
    %v283 = vmax.f32 %v223, -9.2103405
    %v284 = vmax.f32 %v224, -9.2103405
    %v285 = vmax.f32 %v225, -9.2103405
    %v286 = vmax.f32 %v226, -9.2103405
    %v287 = vmin.f32 %v275, -0.000100005
    %v288 = vmin.f32 %v276, -0.000100005
    %v289 = vmin.f32 %v277, -0.000100005
    %v290 = vmin.f32 %v278, -0.000100005
    %v291 = vmin.f32 %v279, -0.000100005
    %v292 = vmin.f32 %v280, -0.000100005
    %v293 = vmin.f32 %v281, -0.000100005
    %v294 = vmin.f32 %v282, -0.000100005
    %v295 = vmin.f32 %v283, -0.000100005
    %v296 = vmin.f32 %v284, -0.000100005
    %v297 = vmin.f32 %v285, -0.000100005
    %v298 = vmin.f32 %v286, -0.000100005
    %v299 = vsub.f32 %v215, %v95
    %v300 = vsub.f32 %v216, %v96
    %v301 = vsub.f32 %v217, %v97
    %v302 = vsub.f32 %v218, %v98
    %v303 = vsub.f32 %v219, %v99
    %v304 = vsub.f32 %v220, %v100
    %v305 = vsub.f32 %v221, %v101
    %v306 = vsub.f32 %v222, %v102
    %v307 = vsub.f32 %v223, %v103
    %v308 = vsub.f32 %v224, %v104
    %v309 = vsub.f32 %v225, %v105
    %v310 = vsub.f32 %v226, %v106
    %v311 = vmax.f32 %v299, -9.2103405
    %v312 = vmax.f32 %v300, -9.2103405
    %v313 = vmax.f32 %v301, -9.2103405
    %v314 = vmax.f32 %v302, -9.2103405
    %v315 = vmax.f32 %v303, -9.2103405
    %v316 = vmax.f32 %v304, -9.2103405
    %v317 = vmax.f32 %v305, -9.2103405
    %v318 = vmax.f32 %v306, -9.2103405
    %v319 = vmax.f32 %v307, -9.2103405
    %v320 = vmax.f32 %v308, -9.2103405
    %v321 = vmax.f32 %v309, -9.2103405
    %v322 = vmax.f32 %v310, -9.2103405
    %v323 = vmin.f32 %v311, -0.000100005
    %v324 = vmin.f32 %v312, -0.000100005
    %v325 = vmin.f32 %v313, -0.000100005
    %v326 = vmin.f32 %v314, -0.000100005
    %v327 = vmin.f32 %v315, -0.000100005
    %v328 = vmin.f32 %v316, -0.000100005
    %v329 = vmin.f32 %v317, -0.000100005
    %v330 = vmin.f32 %v318, -0.000100005
    %v331 = vmin.f32 %v319, -0.000100005
    %v332 = vmin.f32 %v320, -0.000100005
    %v333 = vmin.f32 %v321, -0.000100005
    %v334 = vmin.f32 %v322, -0.000100005
    %vm335 = vcmp.eq.f32.partialorder %v107, 1.0
    %vm336 = vcmp.eq.f32.partialorder %v108, 1.0
    %vm337 = vcmp.eq.f32.partialorder %v109, 1.0
    %vm338 = vcmp.eq.f32.partialorder %v110, 1.0
    %vm339 = vcmp.eq.f32.partialorder %v111, 1.0
    %vm340 = vcmp.eq.f32.partialorder %v112, 1.0
    %vm341 = vcmp.eq.f32.partialorder %v113, 1.0
    %vm342 = vcmp.eq.f32.partialorder %v114, 1.0
    %vm343 = vcmp.eq.f32.partialorder %v115, 1.0
    %vm344 = vcmp.eq.f32.partialorder %v116, 1.0
    %vm345 = vcmp.eq.f32.partialorder %v117, 1.0
    %vm346 = vcmp.eq.f32.partialorder %v118, 1.0
    %vm347 = vcmp.lt.f32.partialorder %v107, 1.0
    %vm348 = vcmp.lt.f32.partialorder %v108, 1.0
    %vm349 = vcmp.lt.f32.partialorder %v109, 1.0
    %vm350 = vcmp.lt.f32.partialorder %v110, 1.0
    %vm351 = vcmp.lt.f32.partialorder %v111, 1.0
    %vm352 = vcmp.lt.f32.partialorder %v112, 1.0
    %vm353 = vcmp.lt.f32.partialorder %v113, 1.0
    %vm354 = vcmp.lt.f32.partialorder %v114, 1.0
    %vm355 = vcmp.lt.f32.partialorder %v115, 1.0
    %vm356 = vcmp.lt.f32.partialorder %v116, 1.0
    %vm357 = vcmp.lt.f32.partialorder %v117, 1.0
    %vm358 = vcmp.lt.f32.partialorder %v118, 1.0
    %v359 = vsub.f32 1.0, %v263
    %v360 = vsub.f32 1.0, %v264
    %v361 = vsub.f32 1.0, %v265
    %v362 = vsub.f32 1.0, %v266
    %v363 = vsub.f32 1.0, %v267
    %v364 = vsub.f32 1.0, %v268
    %v365 = vsub.f32 1.0, %v269
    %v366 = vsub.f32 1.0, %v270
    %v367 = vsub.f32 1.0, %v271
    %v368 = vsub.f32 1.0, %v272
    %v369 = vsub.f32 1.0, %v273
    %v370 = vsub.f32 1.0, %v274
    %v371 = vmul.f32 %v287, %v359
    %v372 = vmul.f32 %v288, %v360
    %v373 = vmul.f32 %v289, %v361
    %v374 = vmul.f32 %v290, %v362
    %v375 = vmul.f32 %v291, %v363
    %v376 = vmul.f32 %v292, %v364
    %v377 = vmul.f32 %v293, %v365
    %v378 = vmul.f32 %v294, %v366
    %v379 = vmul.f32 %v295, %v367
    %v380 = vmul.f32 %v296, %v368
    %v381 = vmul.f32 %v297, %v369
    %v382 = vmul.f32 %v298, %v370
    %v383 = vmul.f32 %v371, %v359
    %v384 = vmul.f32 %v372, %v360
    %v385 = vmul.f32 %v373, %v361
    %v386 = vmul.f32 %v374, %v362
    %v387 = vmul.f32 %v375, %v363
    %v388 = vmul.f32 %v376, %v364
    %v389 = vmul.f32 %v377, %v365
    %v390 = vmul.f32 %v378, %v366
    %v391 = vmul.f32 %v379, %v367
    %v392 = vmul.f32 %v380, %v368
    %v393 = vmul.f32 %v381, %v369
    %v394 = vmul.f32 %v382, %v370
    %v395 = vsub.f32 1.0, %v107
    %v396 = vsub.f32 1.0, %v108
    %v397 = vsub.f32 1.0, %v109
    %v398 = vsub.f32 1.0, %v110
    %v399 = vsub.f32 1.0, %v111
    %v400 = vsub.f32 1.0, %v112
    %v401 = vsub.f32 1.0, %v113
    %v402 = vsub.f32 1.0, %v114
    %v403 = vsub.f32 1.0, %v115
    %v404 = vsub.f32 1.0, %v116
    %v405 = vsub.f32 1.0, %v117
    %v406 = vsub.f32 1.0, %v118
    %v407 = vmul.f32 %v395, %v395
    %v408 = vmul.f32 %v396, %v396
    %v409 = vmul.f32 %v397, %v397
    %v410 = vmul.f32 %v398, %v398
    %v411 = vmul.f32 %v399, %v399
    %v412 = vmul.f32 %v400, %v400
    %v413 = vmul.f32 %v401, %v401
    %v414 = vmul.f32 %v402, %v402
    %v415 = vmul.f32 %v403, %v403
    %v416 = vmul.f32 %v404, %v404
    %v417 = vmul.f32 %v405, %v405
    %v418 = vmul.f32 %v406, %v406
    %v419 = vmul.f32 %v263, %v263
    %v420 = vmul.f32 %v264, %v264
    %v421 = vmul.f32 %v265, %v265
    %v422 = vmul.f32 %v266, %v266
    %v423 = vmul.f32 %v267, %v267
    %v424 = vmul.f32 %v268, %v268
    %v425 = vmul.f32 %v269, %v269
    %v426 = vmul.f32 %v270, %v270
    %v427 = vmul.f32 %v271, %v271
    %v428 = vmul.f32 %v272, %v272
    %v429 = vmul.f32 %v273, %v273
    %v430 = vmul.f32 %v274, %v274
    %v431 = vmul.f32 %v323, %v419
    %v432 = vmul.f32 %v324, %v420
    %v433 = vmul.f32 %v325, %v421
    %v434 = vmul.f32 %v326, %v422
    %v435 = vmul.f32 %v327, %v423
    %v436 = vmul.f32 %v328, %v424
    %v437 = vmul.f32 %v329, %v425
    %v438 = vmul.f32 %v330, %v426
    %v439 = vmul.f32 %v331, %v427
    %v440 = vmul.f32 %v332, %v428
    %v441 = vmul.f32 %v333, %v429
    %v442 = vmul.f32 %v334, %v430
    %v443 = vmul.f32 %v407, %v407
    %v444 = vmul.f32 %v408, %v408
    %v445 = vmul.f32 %v409, %v409
    %v446 = vmul.f32 %v410, %v410
    %v447 = vmul.f32 %v411, %v411
    %v448 = vmul.f32 %v412, %v412
    %v449 = vmul.f32 %v413, %v413
    %v450 = vmul.f32 %v414, %v414
    %v451 = vmul.f32 %v415, %v415
    %v452 = vmul.f32 %v416, %v416
    %v453 = vmul.f32 %v417, %v417
    %v454 = vmul.f32 %v418, %v418
    %v455 = vmul.f32 %v431, %v443
    %v456 = vmul.f32 %v432, %v444
    %v457 = vmul.f32 %v433, %v445
    %v458 = vmul.f32 %v434, %v446
    %v459 = vmul.f32 %v435, %v447
    %v460 = vmul.f32 %v436, %v448
    %v461 = vmul.f32 %v437, %v449
    %v462 = vmul.f32 %v438, %v450
    %v463 = vmul.f32 %v439, %v451
    %v464 = vmul.f32 %v440, %v452
    %v465 = vmul.f32 %v441, %v453
    %v466 = vmul.f32 %v442, %v454
    %v467 = vld [vmem:[#allocation2] sm:$0xff]
    %v468 = vld [vmem:[#allocation2 + $0x8] sm:$0xff]
    %v469 = vld [vmem:[#allocation2 + $0x10] sm:$0xff]
    %v470 = vld [vmem:[#allocation2 + $0x18] sm:$0xff]
    %v471 = vld [vmem:[#allocation2 + $0x20] sm:$0xff]
    %v472 = vld [vmem:[#allocation2 + $0x28] sm:$0xff]
    %v473 = vld [vmem:[#allocation2 + $0x30] sm:$0xff]
    %v474 = vld [vmem:[#allocation2 + $0x38] sm:$0xff]
    %v475 = vld [vmem:[#allocation2 + $0x40] sm:$0xff]
    %v476 = vld [vmem:[#allocation2 + $0x48] sm:$0xff]
    %v477 = vld [vmem:[#allocation2 + $0x50] sm:$0xff]
    %v478 = vld [vmem:[#allocation2 + $0x58] sm:$0xff]
    %v479 = vsel %vm347, %v455, 0.0
    %v480 = vsel %vm348, %v456, 0.0
    %v481 = vsel %vm349, %v457, 0.0
    %v482 = vsel %vm350, %v458, 0.0
    %v483 = vsel %vm351, %v459, 0.0
    %v484 = vsel %vm352, %v460, 0.0
    %v485 = vsel %vm353, %v461, 0.0
    %v486 = vsel %vm354, %v462, 0.0
    %v487 = vsel %vm355, %v463, 0.0
    %v488 = vsel %vm356, %v464, 0.0
    %v489 = vsel %vm357, %v465, 0.0
    %v490 = vsel %vm358, %v466, 0.0
    %v491 = vsel %vm335, %v383, %v479
    %v492 = vsel %vm336, %v384, %v480
    %v493 = vsel %vm337, %v385, %v481
    %v494 = vsel %vm338, %v386, %v482
    %v495 = vsel %vm339, %v387, %v483
    %v496 = vsel %vm340, %v388, %v484
    %v497 = vsel %vm341, %v389, %v485
    %v498 = vsel %vm342, %v390, %v486
    %v499 = vsel %vm343, %v391, %v487
    %v500 = vsel %vm344, %v392, %v488
    %v501 = vsel %vm345, %v393, %v489
    %v502 = vsel %vm346, %v394, %v490
    %v503 = vadd.f32 %v467, %v491
    %v504 = vadd.f32 %v468, %v492
    %v505 = vadd.f32 %v469, %v493
    %v506 = vadd.f32 %v470, %v494
    %v507 = vadd.f32 %v471, %v495
    %v508 = vadd.f32 %v472, %v496
    %v509 = vadd.f32 %v473, %v497
    %v510 = vadd.f32 %v474, %v498
    %v511 = vadd.f32 %v475, %v499
    %v512 = vadd.f32 %v476, %v500
    %v513 = vadd.f32 %v477, %v501
    %v514 = vadd.f32 %v478, %v502
    %vm515 = vcmask 130048
    %516 = vst.msk [vmem:[#allocation2] sm:$0xff] %vm515, %v503
    %517 = vst.msk [vmem:[#allocation2 + $0x8] sm:$0xff] %vm515, %v504
    %518 = vst.msk [vmem:[#allocation2 + $0x10] sm:$0xff] %vm515, %v505
    %519 = vst.msk [vmem:[#allocation2 + $0x18] sm:$0xff] %vm515, %v506
    %520 = vst.msk [vmem:[#allocation2 + $0x20] sm:$0xff] %vm515, %v507
    %521 = vst.msk [vmem:[#allocation2 + $0x28] sm:$0xff] %vm515, %v508
    %522 = vst.msk [vmem:[#allocation2 + $0x30] sm:$0xff] %vm515, %v509
    %523 = vst.msk [vmem:[#allocation2 + $0x38] sm:$0xff] %vm515, %v510
    %524 = vst.msk [vmem:[#allocation2 + $0x40] sm:$0xff] %vm515, %v511
    %525 = vst.msk [vmem:[#allocation2 + $0x48] sm:$0xff] %vm515, %v512
    %526 = vst.msk [vmem:[#allocation2 + $0x50] sm:$0xff] %vm515, %v513
    %527 = vst.msk [vmem:[#allocation2 + $0x58] sm:$0xff] %vm515, %v514
    %v528 = vld [vmem:[#allocation3] sm:$0x1]
    %v529 = vsel %vm335, 1.0, 0.0
    %v530 = vsel %vm336, 1.0, 0.0
    %v531 = vsel %vm337, 1.0, 0.0
    %v532 = vsel %vm338, 1.0, 0.0
    %v533 = vsel %vm339, 1.0, 0.0
    %v534 = vsel %vm340, 1.0, 0.0
    %v535 = vsel %vm341, 1.0, 0.0
    %v536 = vsel %vm342, 1.0, 0.0
    %v537 = vsel %vm343, 1.0, 0.0
    %v538 = vsel %vm344, 1.0, 0.0
    %v539 = vsel %vm345, 1.0, 0.0
    %v540 = vsel %vm346, 1.0, 0.0
    %v541 = vsel %vm515, %v529, 0.0
    %v542 = vsel %vm515, %v530, 0.0
    %v543 = vadd.f32 %v541, %v542
    %v544 = vsel %vm515, %v531, 0.0
    %v545 = vadd.f32 %v543, %v544
    %v546 = vsel %vm515, %v532, 0.0
    %v547 = vadd.f32 %v545, %v546
    %v548 = vsel %vm515, %v533, 0.0
    %v549 = vadd.f32 %v547, %v548
    %v550 = vsel %vm515, %v534, 0.0
    %v551 = vadd.f32 %v549, %v550
    %v552 = vsel %vm515, %v535, 0.0
    %v553 = vadd.f32 %v551, %v552
    %v554 = vsel %vm515, %v536, 0.0
    %v555 = vadd.f32 %v553, %v554
    %v556 = vsel %vm515, %v537, 0.0
    %v557 = vadd.f32 %v555, %v556
    %v558 = vsel %vm515, %v538, 0.0
    %v559 = vadd.f32 %v557, %v558
    %v560 = vsel %vm515, %v539, 0.0
    %v561 = vadd.f32 %v559, %v560
    %v562 = vsel %vm515, %v540, 0.0
    %v563 = vadd.f32 %v561, %v562
    %v564 = vrot.slane %v563, 4
    %v565 = vadd.f32 %v563, %v564
    %v566 = vrot.slane %v565, 2
    %v567 = vadd.f32 %v565, %v566
    %v568 = vrot.slane %v567, 1
    %v569 = vadd.f32 %v567, %v568
    %v570 = vadd.f32 %v528, %v569
    %vm571 = vcmask 122880
    %572 = vst.msk [vmem:[#allocation3] sm:$0x1] %vm571, %v570
    // Predicated region
    $region14: #{tpu_custom_call.1} parent=1 // pred_check
      %p573 = pneg %p76
    $region15: #{tpu_custom_call.1} parent=1 // pred_check_branch
      %575 = sbr.rel (%p573) target = $region17
    $region16: #{tpu_custom_call.1} parent=1 // pred_region
      %v576 = vld [vmem:[#allocation2] sm:$0xff]
      %v577 = vld [vmem:[#allocation2 + $0x8] sm:$0xff]
      %v578 = vld [vmem:[#allocation2 + $0x10] sm:$0xff]
      %v579 = vld [vmem:[#allocation2 + $0x18] sm:$0xff]
      %v580 = vld [vmem:[#allocation2 + $0x20] sm:$0xff]
      %v581 = vld [vmem:[#allocation2 + $0x28] sm:$0xff]
      %v582 = vld [vmem:[#allocation2 + $0x30] sm:$0xff]
      %v583 = vld [vmem:[#allocation2 + $0x38] sm:$0xff]
      %v584 = vld [vmem:[#allocation2 + $0x40] sm:$0xff]
      %v585 = vld [vmem:[#allocation2 + $0x48] sm:$0xff]
      %v586 = vld [vmem:[#allocation2 + $0x50] sm:$0xff]
      %v587 = vld [vmem:[#allocation2 + $0x58] sm:$0xff]
      %v588 = vsel %vm515, %v576, 0.0
      %v589 = vsel %vm515, %v577, 0.0
      %v590 = vadd.f32 %v588, %v589
      %v591 = vsel %vm515, %v578, 0.0
      %v592 = vadd.f32 %v590, %v591
      %v593 = vsel %vm515, %v579, 0.0
      %v594 = vadd.f32 %v592, %v593
      %v595 = vsel %vm515, %v580, 0.0
      %v596 = vadd.f32 %v594, %v595
      %v597 = vsel %vm515, %v581, 0.0
      %v598 = vadd.f32 %v596, %v597
      %v599 = vsel %vm515, %v582, 0.0
      %v600 = vadd.f32 %v598, %v599
      %v601 = vsel %vm515, %v583, 0.0
      %v602 = vadd.f32 %v600, %v601
      %v603 = vsel %vm515, %v584, 0.0
      %v604 = vadd.f32 %v602, %v603
      %v605 = vsel %vm515, %v585, 0.0
      %v606 = vadd.f32 %v604, %v605
      %v607 = vsel %vm515, %v586, 0.0
      %v608 = vadd.f32 %v606, %v607
      %v609 = vsel %vm515, %v587, 0.0
      %v610 = vadd.f32 %v608, %v609
      %611 = vadd.xlane.f32.xlu0 %v610
      %v612 = vpop.xlane.xlu0 %611
      %v613 = vrot.slane %v612, 4
      %v614 = vadd.f32 %v612, %v613
      %v615 = vrot.slane %v614, 2
      %v616 = vadd.f32 %v614, %v615
      %v617 = vrot.slane %v616, 1
      %v618 = vadd.f32 %v616, %v617
      %s619 = vtos %v618
      %s620 = scalar_lea.smem [#allocation4], 0
      %621 = sst [smem:[%s620]] %s619
      %v622 = vld [vmem:[#allocation3] sm:$0x1]
      %v623 = vsel %vm571, %v622, 0.0
      %624 = vadd.xlane.f32.xlu0 %v623
      %v625 = vpop.xlane.xlu0 %624
      %v626 = vrot.slane %v625, 4
      %v627 = vadd.f32 %v625, %v626
      %v628 = vrot.slane %v627, 2
      %v629 = vadd.f32 %v627, %v628
      %v630 = vrot.slane %v629, 1
      %v631 = vadd.f32 %v629, %v630
      %s632 = vtos %v631
      %s633 = scalar_lea.smem [#allocation4], 1
      %634 = sst [smem:[%s633]] %s632
    $region17: #{tpu_custom_call.1} parent=1 // pred_fallthru
      _
    // Predicated region
    $region18: #{tpu_custom_call.1} parent=1 // pred_check
      _
    $region19: #{tpu_custom_call.1} parent=1 // pred_check_branch
      %636 = sbr.rel (0) target = $region21
    $region20: #{tpu_custom_call.1} parent=1 // pred_region
      %638 = vsyncadd [#allocation5], 0
      %s640 = sshll.u32 %s2, 4
      %s641 = int_to_ptr.hbm [resolvable:$true] %s640
      %643 = dma.smem_to_hbm [#allocation4], 16, %s641, [#allocation5]
    $region21: #{tpu_custom_call.1} parent=1 // pred_fallthru
      _
    // Predicated region
    $region22: #{tpu_custom_call.1} parent=1 // pred_check
      _
    $region23: #{tpu_custom_call.1} parent=1 // pred_check_branch
      %645 = sbr.rel (0) target = $region25
    $region24: #{tpu_custom_call.1} parent=1 // pred_region
      %647 = dma.done [#allocation5], 16
    $region25: #{tpu_custom_call.1} parent=1 // pred_fallthru
      _
    %648 = sfence
    %649 = vsyncpa [#allocation5], 1

</llo_original>
